<compile_context>
chip_gen: v6e
topology: v6e:2x2x1
jax: 0.10.0
libtpu: 0.0.40
codegen_flags: <defaults>
</compile_context>

<pallas_src>
import functools
import math

import jax
import jax.numpy as jnp
from jax.experimental import pallas as pl
from jax.experimental.pallas import tpu as pltpu


def _round_up(x, m):
    return ((x + m - 1) // m) * m


def _pick_chunk(k):
    for c in (16, 8, 4, 2, 1):
        if k % c == 0:
            return c
    return 1


# ---------------------------------------------------------------------------
# Pallas kernel 1: tiled masked pairwise squared distances.
#   o[i, j] = |c_i - p_j|^2  if (same batch and within radius) else +inf
#   Per-point / per-center norms are precomputed inputs (hoisted).
# ---------------------------------------------------------------------------
def _sqdist_kernel(c_ref, cn_ref, cb_ref, p_ref, pn_ref, pb_ref, o_ref, *, r2):
    d2 = (cn_ref[...] + pn_ref[...]
          - 2.0 * jnp.dot(c_ref[...], p_ref[...],
                          preferred_element_type=jnp.float32))
    d2 = jnp.maximum(d2, 0.0)
    valid = (d2 <= r2) & (cb_ref[...] == pb_ref[...])      # int32 batch compare
    o_ref[...] = jnp.where(valid, d2, jnp.inf)


def masked_sqdist(c8, cn, cb, p8t, pn, pb, r, *, tm, tn):
    Mp = c8.shape[0]
    Np = p8t.shape[1]
    kern = functools.partial(_sqdist_kernel, r2=float(r) * float(r))
    return pl.pallas_call(
        kern,
        out_shape=jax.ShapeDtypeStruct((Mp, Np), jnp.float32),
        grid_spec=pltpu.PrefetchScalarGridSpec(
            num_scalar_prefetch=0,
            grid=(Mp // tm, Np // tn),
            in_specs=[
                pl.BlockSpec((tm, 8), lambda i, j: (i, 0)),
                pl.BlockSpec((tm, 1), lambda i, j: (i, 0)),
                pl.BlockSpec((tm, 1), lambda i, j: (i, 0)),
                pl.BlockSpec((8, tn), lambda i, j: (0, j)),
                pl.BlockSpec((1, tn), lambda i, j: (0, j)),
                pl.BlockSpec((1, tn), lambda i, j: (0, j)),
            ],
            out_specs=pl.BlockSpec((tm, tn), lambda i, j: (i, j)),
        ),
        compiler_params=pltpu.CompilerParams(
            dimension_semantics=("parallel", "parallel")),
    )(c8, cn, cb, p8t, pn, pb)


# ---------------------------------------------------------------------------
# Pallas kernel 2: dense pre-projection  P = [x, pos] @ W1  over all points.
# bf16 operands, f32 accumulation, bf16 output (lane-dense Hp).
# ---------------------------------------------------------------------------
def _preproject_kernel(f_ref, w_ref, o_ref):
    o_ref[...] = jnp.dot(f_ref[...], w_ref[...],
                         preferred_element_type=jnp.float32).astype(o_ref.dtype)


def preproject(feat_all, w1p_bf16, *, tr):
    Np, Dp = feat_all.shape
    Hp = w1p_bf16.shape[1]
    return pl.pallas_call(
        _preproject_kernel,
        out_shape=jax.ShapeDtypeStruct((Np, Hp), jnp.bfloat16),
        grid_spec=pltpu.PrefetchScalarGridSpec(
            num_scalar_prefetch=0,
            grid=(Np // tr,),
            in_specs=[
                pl.BlockSpec((tr, Dp), lambda i: (i, 0)),
                pl.BlockSpec((Dp, Hp), lambda i: (0, 0)),
            ],
            out_specs=pl.BlockSpec((tr, Hp), lambda i: (i, 0)),
        ),
        compiler_params=pltpu.CompilerParams(dimension_semantics=("parallel",)),
    )(feat_all, w1p_bf16)


# ---------------------------------------------------------------------------
# Pallas kernel 3: fused neighbor gather + PointConv MLP tail + masked max.
#   For each center i and each of its K neighbors j (indices in SMEM):
#     h1 = relu(P[j] + Q[i])                (bf16, P gathered by manual DMA)
#     h2 = relu(h1 @ W2 + b2)               (MXU, f32 accumulation)
#     out[i] = max over valid j of h2       (multiplicative mask, baseline 0)
#   P stays in HBM (memory_space=pl.ANY); rows are DMA'd K-chunk by K-chunk
#   into a double-buffered VMEM staging buffer.
# ---------------------------------------------------------------------------
def _pointconv_kernel(idx_ref, q_ref, mask_ref, w2_ref, b2_ref, p_hbm, o_ref,
                      buf, sem):
    tm, hp = q_ref.shape
    cp = o_ref.shape[-1]
    k_chunk = buf.shape[2]
    k_total = mask_ref.shape[1]
    n_chunks = k_total // k_chunk
    row0 = pl.program_id(0) * tm

    def issue(chunk, slot):
        base = chunk * k_chunk

        @pl.loop(0, tm)
        def _row(r):
            @pl.loop(0, k_chunk)
            def _col(k):
                src = idx_ref[row0 + r, base + k]
                pltpu.make_async_copy(
                    p_hbm.at[pl.ds(src, 1)],
                    buf.at[slot, r, pl.ds(k, 1)],
                    sem.at[slot],
                ).start()

    def wait(slot):
        # One wait per issued row-copy; descriptor only needs matching size.
        @pl.loop(0, tm * k_chunk)
        def _w(t):
            pltpu.make_async_copy(
                p_hbm.at[pl.ds(0, 1)],
                buf.at[slot, 0, pl.ds(0, 1)],
                sem.at[slot],
            ).wait()

    issue(0, 0)

    q = q_ref[...]                       # (tm, hp) bf16
    w2 = w2_ref[...]                     # (hp, cp) bf16
    b2 = b2_ref[...]                     # (1, cp)  f32
    acc = jnp.zeros((tm, cp), jnp.float32)

    for c in range(n_chunks):            # static unroll over K-chunks
        slot = c & 1
        wait(slot)
        if c + 1 < n_chunks:
            issue(c + 1, 1 - slot)
        p = buf[slot]                                          # (tm, kc, hp) bf16
        h1 = jnp.maximum(p + q[:, None, :], 0.0)               # bf16 add + relu
        h2 = jnp.dot(h1.reshape(tm * k_chunk, hp), w2,
                     preferred_element_type=jnp.float32) + b2
        h2 = jnp.maximum(h2, 0.0).reshape(tm, k_chunk, cp)
        m = mask_ref[:, c * k_chunk:(c + 1) * k_chunk]         # (tm, kc) f32
        h2 = h2 * m[:, :, None]                                # multiplicative mask
        acc = jnp.maximum(acc, jnp.max(h2, axis=1))

    o_ref[...] = acc


def pointconv_fused(nbr_idx, q, mask, w2p, b2p, P, *, tm, k_chunk):
    Mp, K = nbr_idx.shape
    Hp = q.shape[1]
    Cp = w2p.shape[1]
    return pl.pallas_call(
        _pointconv_kernel,
        out_shape=jax.ShapeDtypeStruct((Mp, Cp), jnp.float32),
        grid_spec=pltpu.PrefetchScalarGridSpec(
            num_scalar_prefetch=1,                      # nbr_idx -> SMEM
            grid=(Mp // tm,),
            in_specs=[
                pl.BlockSpec((tm, Hp), lambda i, idx: (i, 0)),   # q
                pl.BlockSpec((tm, K), lambda i, idx: (i, 0)),    # mask
                pl.BlockSpec((Hp, Cp), lambda i, idx: (0, 0)),   # w2
                pl.BlockSpec((1, Cp), lambda i, idx: (0, 0)),    # b2
                pl.BlockSpec(memory_space=pl.ANY),               # P (HBM)
            ],
            out_specs=pl.BlockSpec((tm, Cp), lambda i, idx: (i, 0)),
            scratch_shapes=[
                pltpu.VMEM((2, tm, k_chunk, Hp), jnp.bfloat16),  # staging
                pltpu.SemaphoreType.DMA((2,)),
            ],
        ),
        compiler_params=pltpu.CompilerParams(
            dimension_semantics=("parallel",),
            vmem_limit_bytes=32 * 1024 * 1024,
        ),
    )(nbr_idx, q, mask, w2p, b2p, P)


# ---------------------------------------------------------------------------
# JAX glue: farthest point sampling (vmapped over batches) + neighbor top-k.
# ---------------------------------------------------------------------------
def fps_single(pos_seg, n_sample):
    """Deterministic FPS over one batch segment (start = point 0)."""
    n = pos_seg.shape[0]
    sel0 = jnp.zeros((n_sample,), jnp.int32)
    dist0 = jnp.full((n,), jnp.inf, jnp.float32)

    def body(i, carry):
        sel, dist, last = carry
        d = jnp.sum((pos_seg - pos_seg[last]) ** 2, axis=-1)
        dist = jnp.minimum(dist, d)
        nxt = jnp.argmax(dist).astype(jnp.int32)
        sel = sel.at[i].set(nxt)
        return sel, dist, nxt

    sel, _, _ = jax.lax.fori_loop(1, n_sample, body, (sel0, dist0, jnp.int32(0)))
    return sel


def sa_module_forward(x, pos, batch, params, *, ratio, r,
                      batch_size, num_batches, max_num_neighbors=64):
    N, C_in = x.shape
    w1, b1, w2, b2 = params
    D_in = C_in + 3
    H = w1.shape[1]
    C_out = w2.shape[1]

    # lane-dense padded sizes (kept at 128: real H/C_out are small, and the
    # binding units here are VALU/HBM, not MXU width)
    D_pad = _round_up(D_in, 8)
    Hp = _round_up(H, 128)
    Cp = _round_up(C_out, 128)

    w1p = jnp.pad(w1.astype(jnp.float32), ((0, D_pad - D_in), (0, Hp - H)))
    b1p = jnp.pad(b1.astype(jnp.float32), ((0, 0), (0, Hp - H)))
    w2p = jnp.pad(w2.astype(jnp.float32),
                  ((0, Hp - H), (0, Cp - C_out))).astype(jnp.bfloat16)
    b2p = jnp.pad(b2.astype(jnp.float32), ((0, 0), (0, Cp - C_out)))

    # --- fps(pos, batch, ratio), vmapped over equal-size contiguous batches ---
    n_sample = int(math.ceil(ratio * batch_size))
    pos_b = pos.reshape(num_batches, batch_size, 3)
    sel = jax.vmap(lambda p: fps_single(p, n_sample))(pos_b)          # (B, n_sample)
    idx = (sel + (jnp.arange(num_batches, dtype=jnp.int32)
                  * batch_size)[:, None]).reshape(-1)
    centers = pos[idx]                                                # (M, 3)
    cbatch = batch[idx]                                               # (M,)
    M = num_batches * n_sample

    # --- radius query: tiled masked sqdist (Pallas) + top-k selection ---
    tn = 1024 if N > 1024 else _round_up(N, 128)
    N_pad = _round_up(N, tn)
    tm_d = 128 if M > 128 else _round_up(M, 8)
    M_pad_d = _round_up(M, tm_d)

    c8 = jnp.pad(centers.astype(jnp.float32), ((0, M_pad_d - M), (0, 8 - 3)))
    cn = jnp.sum(c8 * c8, axis=1, keepdims=True)                      # (M_pad, 1)
    cb = jnp.pad(cbatch.astype(jnp.int32)[:, None],
                 ((0, M_pad_d - M), (0, 0)), constant_values=-2)
    p8 = jnp.pad(pos.astype(jnp.float32), ((0, N_pad - N), (0, 8 - 3)))
    pn = jnp.sum(p8 * p8, axis=1, keepdims=True).T                    # (1, N_pad)
    pb = jnp.pad(batch.astype(jnp.int32)[None, :],
                 ((0, 0), (0, N_pad - N)), constant_values=-1)
    p8t = p8.T                                                        # (8, N_pad)

    d2m = masked_sqdist(c8, cn, cb, p8t, pn, pb, r, tm=tm_d, tn=tn)[:M]

    K = min(max_num_neighbors, N_pad)
    neg, nbr_idx = jax.lax.top_k(-d2m, K)                             # nearest-K within r
    nbr_mask = neg > -jnp.inf                                         # (M, K)
    nbr_idx = jnp.where(nbr_mask, nbr_idx, 0).astype(jnp.int32)       # safe indices

    # --- pre-projection P = [x, pos] @ W1 over all (padded) points (Pallas) ---
    xa = jnp.pad(x.astype(jnp.float32), ((0, N_pad - N), (0, 0)))
    pa = jnp.pad(pos.astype(jnp.float32), ((0, N_pad - N), (0, 0)))
    feat_all = jnp.concatenate([xa, pa], axis=-1)
    feat_all = jnp.pad(feat_all, ((0, 0), (0, D_pad - D_in))).astype(jnp.bfloat16)
    P = preproject(feat_all, w1p.astype(jnp.bfloat16), tr=tn)         # (N_pad, Hp) bf16

    # per-center correction term  Q_i = b1 - pos_i @ W1_pos   (tiny), bf16
    w1_pos = w1p[C_in:C_in + 3, :]                                    # (3, Hp)
    q = (b1p - centers.astype(jnp.float32) @ w1_pos).astype(jnp.bfloat16)

    # --- fused gather + PointConv tail + masked max (Pallas) ---
    if M > 256:
        tm_pc = 128
    else:
        m16 = _round_up(M, 16)
        tm_pc = m16 if m16 <= 16 else _round_up(m16 // 2, 16)   # >=2 grid steps
    M_pad = _round_up(M, tm_pc)
    k_chunk = _pick_chunk(K)

    idx_pad = jnp.pad(nbr_idx, ((0, M_pad - M), (0, 0)))              # pad rows -> 0
    q_pad = jnp.pad(q, ((0, M_pad - M), (0, 0)))
    mask_pad = jnp.pad(nbr_mask.astype(jnp.float32), ((0, M_pad - M), (0, 0)))

    out = pointconv_fused(idx_pad, q_pad, mask_pad, w2p, b2p, P,
                          tm=tm_pc, k_chunk=k_chunk)                  # (M_pad, Cp)
    x_out = out[:M, :C_out]
    return x_out, centers, cbatch


# ---------------------------------------------------------------------------
if __name__ == "__main__":
    # Small synthetic problem: N=64 points, 2 batch elements of 32 points each.
    N, num_batches, batch_size = 64, 2, 32
    C_in, H, C_out = 4, 32, 32
    D_in = C_in + 3
    ratio, r = 0.5, 0.75

    key = jax.random.PRNGKey(0)
    k1, k2, k3, k4, k5, k6 = jax.random.split(key, 6)

    # Deterministic MLP params for PointConv's `nn` (Lin->ReLU->Lin->ReLU).
    w1 = jax.random.normal(k1, (D_in, H), jnp.float32) / jnp.sqrt(D_in)
    b1 = jax.random.normal(k2, (1, H), jnp.float32) * 0.01
    w2 = jax.random.normal(k3, (H, C_out), jnp.float32) / jnp.sqrt(H)
    b2 = jax.random.normal(k4, (1, C_out), jnp.float32) * 0.01
    params = (w1, b1, w2, b2)

    pos = jax.random.uniform(k5, (N, 3), jnp.float32)
    x = jax.random.normal(k6, (N, C_in), jnp.float32)
    batch = jnp.repeat(jnp.arange(num_batches, dtype=jnp.int32), batch_size)

    x_out, pos_out, batch_out = sa_module_forward(
        x, pos, batch, params, ratio=ratio, r=r,
        batch_size=batch_size, num_batches=num_batches, max_num_neighbors=64)

    jax.block_until_ready((x_out, pos_out, batch_out))
    assert x_out.shape == (num_batches * int(math.ceil(ratio * batch_size)), C_out)
    assert pos_out.shape == (x_out.shape[0], 3)
    assert batch_out.shape == (x_out.shape[0],)
    assert bool(jnp.all(jnp.isfinite(x_out)))
    print("KERNEL_OK")
</pallas_src>

<mosaic_0001>
module attributes {stable_mosaic.version = 11 : i64} {
  func.func @_sqdist_kernel(%arg0: i32, %arg1: i32, %arg2: memref<32x8xf32, #tpu.memory_space<vmem>>, %arg3: memref<32x1xf32, #tpu.memory_space<vmem>>, %arg4: memref<32x1xi32, #tpu.memory_space<vmem>>, %arg5: memref<8x128xf32, #tpu.memory_space<vmem>>, %arg6: memref<1x128xf32, #tpu.memory_space<vmem>>, %arg7: memref<1x128xi32, #tpu.memory_space<vmem>>, %arg8: memref<32x128xf32, #tpu.memory_space<vmem>>) attributes {dimension_semantics = [#tpu.dimension_semantics<parallel>, #tpu.dimension_semantics<parallel>], iteration_bounds = array<i64: 1, 1>, scalar_prefetch = 0 : i64, scratch_operands = 0 : i64, tpu.core_type = #tpu.core_type<tc>, window_params = [{transform_indices = @transform_0, window_bounds = array<i64: 32, 8>}, {transform_indices = @transform_1, window_bounds = array<i64: 32, 1>}, {transform_indices = @transform_2, window_bounds = array<i64: 32, 1>}, {transform_indices = @transform_3, window_bounds = array<i64: 8, 128>}, {transform_indices = @transform_4, window_bounds = array<i64: 1, 128>}, {transform_indices = @transform_5, window_bounds = array<i64: 1, 128>}, {transform_indices = @transform_6, window_bounds = array<i64: 32, 128>}]} {
    %c0 = arith.constant 0 : index
    %c0_0 = arith.constant 0 : index
    %0 = vector.load %arg3[%c0, %c0_0] : memref<32x1xf32, #tpu.memory_space<vmem>>, vector<32x1xf32>
    %c0_1 = arith.constant 0 : index
    %c0_2 = arith.constant 0 : index
    %1 = vector.load %arg6[%c0_1, %c0_2] : memref<1x128xf32, #tpu.memory_space<vmem>>, vector<1x128xf32>
    %2 = vector.broadcast %0 : vector<32x1xf32> to vector<32x128xf32>
    %3 = vector.broadcast %1 : vector<1x128xf32> to vector<32x128xf32>
    %4 = arith.addf %2, %3 : vector<32x128xf32>
    %c0_3 = arith.constant 0 : index
    %c0_4 = arith.constant 0 : index
    %5 = vector.load %arg2[%c0_3, %c0_4] : memref<32x8xf32, #tpu.memory_space<vmem>>, vector<32x8xf32>
    %c0_5 = arith.constant 0 : index
    %c0_6 = arith.constant 0 : index
    %6 = vector.load %arg5[%c0_5, %c0_6] : memref<8x128xf32, #tpu.memory_space<vmem>>, vector<8x128xf32>
    %cst = arith.constant dense<0.000000e+00> : vector<32x128xf32>
    %7 = tpu.matmul %5, %6, %cst {dimension_numbers = #tpu.dot_dimension_numbers<[1], [0], [0], [1], [0, 0, 1, 1], [], []>} : vector<32x8xf32>, vector<8x128xf32>, vector<32x128xf32> -> vector<32x128xf32>
    %cst_7 = arith.constant 2.000000e+00 : f32
    %8 = vector.broadcast %cst_7 : f32 to vector<32x128xf32>
    %9 = arith.mulf %8, %7 : vector<32x128xf32>
    %10 = arith.subf %4, %9 : vector<32x128xf32>
    %cst_8 = arith.constant 0.000000e+00 : f32
    %11 = vector.broadcast %cst_8 : f32 to vector<32x128xf32>
    %12 = arith.maximumf %10, %11 : vector<32x128xf32>
    %cst_9 = arith.constant 5.625000e-01 : f32
    %13 = vector.broadcast %cst_9 : f32 to vector<32x128xf32>
    %14 = arith.cmpf ole, %12, %13 : vector<32x128xf32>
    %c0_10 = arith.constant 0 : index
    %c0_11 = arith.constant 0 : index
    %15 = vector.load %arg4[%c0_10, %c0_11] : memref<32x1xi32, #tpu.memory_space<vmem>>, vector<32x1xi32>
    %c0_12 = arith.constant 0 : index
    %c0_13 = arith.constant 0 : index
    %16 = vector.load %arg7[%c0_12, %c0_13] : memref<1x128xi32, #tpu.memory_space<vmem>>, vector<1x128xi32>
    %17 = vector.broadcast %15 : vector<32x1xi32> to vector<32x128xi32>
    %18 = vector.broadcast %16 : vector<1x128xi32> to vector<32x128xi32>
    %19 = arith.cmpi eq, %17, %18 : vector<32x128xi32>
    %20 = arith.andi %14, %19 : vector<32x128xi1>
    %cst_14 = arith.constant 0x7F800000 : f32
    %21 = vector.broadcast %cst_14 : f32 to vector<32x128xf32>
    %22 = arith.select %20, %12, %21 : vector<32x128xi1>, vector<32x128xf32>
    %c0_15 = arith.constant 0 : index
    %c0_16 = arith.constant 0 : index
    %23 = vector.load %arg8[%c0_15, %c0_16] : memref<32x128xf32, #tpu.memory_space<vmem>>, vector<32x128xf32>
    tpu.vector_store %arg8[%c0_15, %c0_16], %22 {strides = array<i32>} : memref<32x128xf32, #tpu.memory_space<vmem>>, vector<32x128xf32>,
    return
  }
  func.func @transform_0(%arg0: i32, %arg1: i32) -> (i32, i32) {
    %c0_i32 = arith.constant 0 : i32
    %c0_i32_0 = arith.constant 0 : i32
    return %arg0, %c0_i32 : i32, i32
  }
  func.func @transform_1(%arg0: i32, %arg1: i32) -> (i32, i32) {
    %c0_i32 = arith.constant 0 : i32
    %c0_i32_0 = arith.constant 0 : i32
    return %arg0, %c0_i32 : i32, i32
  }
  func.func @transform_2(%arg0: i32, %arg1: i32) -> (i32, i32) {
    %c0_i32 = arith.constant 0 : i32
    %c0_i32_0 = arith.constant 0 : i32
    return %arg0, %c0_i32 : i32, i32
  }
  func.func @transform_3(%arg0: i32, %arg1: i32) -> (i32, i32) {
    %c0_i32 = arith.constant 0 : i32
    %c0_i32_0 = arith.constant 0 : i32
    return %c0_i32, %arg1 : i32, i32
  }
  func.func @transform_4(%arg0: i32, %arg1: i32) -> (i32, i32) {
    %c0_i32 = arith.constant 0 : i32
    %c0_i32_0 = arith.constant 0 : i32
    return %c0_i32, %arg1 : i32, i32
  }
  func.func @transform_5(%arg0: i32, %arg1: i32) -> (i32, i32) {
    %c0_i32 = arith.constant 0 : i32
    %c0_i32_0 = arith.constant 0 : i32
    return %c0_i32, %arg1 : i32, i32
  }
  func.func @transform_6(%arg0: i32, %arg1: i32) -> (i32, i32) {
    %c0_i32 = arith.constant 0 : i32
    return %arg0, %arg1 : i32, i32
  }
}

</mosaic_0001>

<llo_original>
// kernel: tpu_custom_call.1
$region0: #{tpu_custom_call.1}
  #allocation0 [shape = 'u32[]', space=smem, size = 0x4, offset = 0x4, fixed_abs, tag = 'smem constant byte address 0x4 - core index']
  #allocation1 [shape = 'u32[144,128]{1,0:T(1,128)}', space=vmem, size = 0x12000, scoped, tag = 'internal scratch']
  %s0 = inlined_call_operand.vmem [shape: f32[32,8], index: 0, kind: input, shape index: {}]
  %s1 = inlined_call_operand.vmem [shape: f32[32,1], index: 1, kind: input, shape index: {}]
  %s2 = inlined_call_operand.vmem [shape: s32[32,1], index: 2, kind: input, shape index: {}]
  %s3 = inlined_call_operand.vmem [shape: f32[8,128], index: 3, kind: input, shape index: {}]
  %s4 = inlined_call_operand.vmem [shape: f32[1,128], index: 4, kind: input, shape index: {}]
  %s5 = inlined_call_operand.vmem [shape: s32[1,128], index: 5, kind: input, shape index: {}]
  %s6 = inlined_call_operand.hbm [shape: f32[32,128], index: 6, kind: output, shape index: {}]
  %s7 = sld [smem:[#allocation0]]
  $region34: #{tpu_custom_call.1} parent=0
    _
  %s9 = ssub.s32 1, %s7
  %s10 = scalar_select 0, %s9, %s7
  $region1: #{tpu_custom_call.1} parent=0
    #allocation2 [shape = 'u8[16384]{0}', space=vmem, size = 0x4000, scoped, tag = 'output window, operand 0, single buffered']
    #allocation3 [shape = 's32[1]{0}', space=sflag, size = 0x4, scoped, tag = 'scoped memory for tpu_custom_call.1']
    %11 = vsyncpa [#allocation3], 0
    // Predicated region
    $region2: #{tpu_custom_call.1} parent=1 // pred_check
      _
    $region3: #{tpu_custom_call.1} parent=1 // pred_check_branch
      %13 = sbr.rel (0) target = $region5
    $region4: #{tpu_custom_call.1} parent=1 // pred_region
      _
    $region5: #{tpu_custom_call.1} parent=1 // pred_fallthru
      _
    // Predicated region
    $region6: #{tpu_custom_call.1} parent=1 // pred_check
      _
    $region7: #{tpu_custom_call.1} parent=1 // pred_check_branch
      %15 = sbr.rel (0) target = $region9
    $region8: #{tpu_custom_call.1} parent=1 // pred_region
      _
    $region9: #{tpu_custom_call.1} parent=1 // pred_fallthru
      _
    // Predicated region
    $region10: #{tpu_custom_call.1} parent=1 // pred_check
      _
    $region11: #{tpu_custom_call.1} parent=1 // pred_check_branch
      %17 = sbr.rel (0) target = $region13
    $region12: #{tpu_custom_call.1} parent=1 // pred_region
      _
    $region13: #{tpu_custom_call.1} parent=1 // pred_fallthru
      _
    // Predicated region
    $region14: #{tpu_custom_call.1} parent=1 // pred_check
      _
    $region15: #{tpu_custom_call.1} parent=1 // pred_check_branch
      %19 = sbr.rel (0) target = $region17
    $region16: #{tpu_custom_call.1} parent=1 // pred_region
      _
    $region17: #{tpu_custom_call.1} parent=1 // pred_fallthru
      _
    // Predicated region
    $region18: #{tpu_custom_call.1} parent=1 // pred_check
      _
    $region19: #{tpu_custom_call.1} parent=1 // pred_check_branch
      %21 = sbr.rel (0) target = $region21
    $region20: #{tpu_custom_call.1} parent=1 // pred_region
      _
    $region21: #{tpu_custom_call.1} parent=1 // pred_fallthru
      _
    // Predicated region
    $region22: #{tpu_custom_call.1} parent=1 // pred_check
      _
    $region23: #{tpu_custom_call.1} parent=1 // pred_check_branch
      %23 = sbr.rel (0) target = $region25
    $region24: #{tpu_custom_call.1} parent=1 // pred_region
      _
    $region25: #{tpu_custom_call.1} parent=1 // pred_fallthru
      _
    %v24 = vld [vmem:[%s1] sm:$0xff]
    %v25 = vld [vmem:[%s1 + $0x8] sm:$0xff]
    %v26 = vld [vmem:[%s1 + $0x10] sm:$0xff]
    %v27 = vld [vmem:[%s1 + $0x18] sm:$0xff]
    %v28 = vld [vmem:[%s4] sm:$0x1]
    %30 = vset.pattern.permute.xlu0 0
    %31 = vperm.xlu0 %30, %v24
    %v32 = vpop.permute.xlu0 %31
    %35 = vset.pattern.permute.xlu0 0
    %36 = vperm.xlu0 %35, %v25
    %v37 = vpop.permute.xlu0 %36
    %40 = vset.pattern.permute.xlu0 0
    %41 = vperm.xlu0 %40, %v26
    %v42 = vpop.permute.xlu0 %41
    %45 = vset.pattern.permute.xlu0 0
    %46 = vperm.xlu0 %45, %v27
    %v47 = vpop.permute.xlu0 %46
    %v50 = vlaneseq
    %v51 = vshrl.u32 %v50, 7
    %v52 = vsub.s32 0, %v51
    %v53 = vrot.slane %v28, %v52
    %v55 = vadd.f32 %v32, %v53
    %v56 = vadd.f32 %v37, %v53
    %v57 = vadd.f32 %v42, %v53
    %v58 = vadd.f32 %v47, %v53
    %v59 = vld [vmem:[%s0] sm:$0xff]
    %v60 = vld [vmem:[%s0 + $0x8] sm:$0xff]
    %v61 = vld [vmem:[%s0 + $0x10] sm:$0xff]
    %v62 = vld [vmem:[%s0 + $0x18] sm:$0xff]
    %v63 = vld [vmem:[%s3] sm:$0xff]
    %vm64 = vcmask 64512
    %v66 = vsel %vm64, %v59, 0
    %v69 = vsel %vm64, %v60, 0
    %v72 = vsel %vm64, %v61, 0
    %v75 = vsel %vm64, %v62, 0
    %77 = vmatprep.subr.mxu0 0.0
    %78 = vmatpush1.msra.mxu0 0.0
    %79 = vmatprep.subr.mxu0 0.0
    %80 = vmatpush1.msra.mxu0 0.0
    %81 = vmatprep.subr.mxu0 0.0
    %82 = vmatpush1.msra.mxu0 0.0
    %83 = vmatprep.subr.mxu0 0.0
    %84 = vmatpush1.msra.mxu0 0.0
    %85 = vmatprep.subr.mxu0 0.0
    %86 = vmatpush1.msra.mxu0 0.0
    %87 = vmatprep.subr.mxu0 0.0
    %88 = vmatpush1.msra.mxu0 0.0
    %89 = vmatprep.subr.mxu0 0.0
    %90 = vmatpush1.msra.mxu0 0.0
    %91 = vmatprep.subr.mxu0 0.0
    %92 = vmatpush1.msra.mxu0 0.0
    %93 = vmatprep.subr.mxu0 0.0
    %94 = vmatpush1.msra.mxu0 0.0
    %95 = vmatprep.subr.mxu0 0.0
    %96 = vmatpush1.msra.mxu0 0.0
    %97 = vmatprep.subr.mxu0 0.0
    %98 = vmatpush1.msra.mxu0 0.0
    %99 = vmatprep.subr.mxu0 0.0
    %100 = vmatpush1.msra.mxu0 0.0
    %101 = vmatprep.subr.mxu0 0.0
    %102 = vmatpush1.msra.mxu0 0.0
    %103 = vmatprep.subr.mxu0 0.0
    %104 = vmatpush1.msra.mxu0 0.0
    %105 = vmatprep.subr.mxu0 0.0
    %106 = vmatpush1.msra.mxu0 0.0
    %107 = vmatprep.subr.mxu0 0.0
    %108 = vmatpush1.msra.mxu0 %v63
    %109 = vmatprep.subr.mxu0 0.0
    %110 = vmatpush2.msra.mxu0 0.0
    %111 = vmatprep.subr.mxu0 0.0
    %112 = vmatpush2.msra.mxu0 0.0
    %113 = vmatprep.subr.mxu0 0.0
    %114 = vmatpush2.msra.mxu0 0.0
    %115 = vmatprep.subr.mxu0 0.0
    %116 = vmatpush2.msra.mxu0 0.0
    %117 = vmatprep.subr.mxu0 0.0
    %118 = vmatpush2.msra.mxu0 0.0
    %119 = vmatprep.subr.mxu0 0.0
    %120 = vmatpush2.msra.mxu0 0.0
    %121 = vmatprep.subr.mxu0 0.0
    %122 = vmatpush2.msra.mxu0 0.0
    %123 = vmatprep.subr.mxu0 0.0
    %124 = vmatpush2.msra.mxu0 0.0
    %125 = vmatprep.subr.mxu0 0.0
    %126 = vmatpush2.msra.mxu0 0.0
    %127 = vmatprep.subr.mxu0 0.0
    %128 = vmatpush2.msra.mxu0 0.0
    %129 = vmatprep.subr.mxu0 0.0
    %130 = vmatpush2.msra.mxu0 0.0
    %131 = vmatprep.subr.mxu0 0.0
    %132 = vmatpush2.msra.mxu0 0.0
    %133 = vmatprep.subr.mxu0 0.0
    %134 = vmatpush2.msra.mxu0 0.0
    %135 = vmatprep.subr.mxu0 0.0
    %136 = vmatpush2.msra.mxu0 0.0
    %137 = vmatprep.subr.mxu0 0.0
    %138 = vmatpush2.msra.mxu0 0.0
    %139 = vmatprep.subr.mxu0 0.0
    %140 = vmatpush2.msra.mxu0 0.0
    %141 = vmatprep.mubr.f32.mxu0 0.0
    %142 = vmatmul.mubr.f32.gmra.mxu0 %v66
    %v143 = vpop.f32.mrf.mxu0
    %v144 = vadd.f32 0.0, %v143
    %v145 = vpop.f32.mrf.mxu0
    %146 = vmatprep.mubr.f32.mxu0 0.0
    %147 = vmatmul.mubr.f32.gmra.mxu0 %v69
    %v148 = vpop.f32.mrf.mxu0
    %v149 = vadd.f32 0.0, %v148
    %v150 = vpop.f32.mrf.mxu0
    %151 = vmatprep.mubr.f32.mxu0 0.0
    %152 = vmatmul.mubr.f32.gmra.mxu0 %v72
    %v153 = vpop.f32.mrf.mxu0
    %v154 = vadd.f32 0.0, %v153
    %v155 = vpop.f32.mrf.mxu0
    %156 = vmatprep.mubr.f32.mxu0 0.0
    %157 = vmatmul.mubr.f32.gmra.mxu0 %v75
    %v158 = vpop.f32.mrf.mxu0
    %v159 = vadd.f32 0.0, %v158
    %v160 = vpop.f32.mrf.mxu0
    %161 = vdwg.mxu0
    %v162 = vmul.f32 %v144, 2.0
    %v163 = vmul.f32 %v149, 2.0
    %v164 = vmul.f32 %v154, 2.0
    %v165 = vmul.f32 %v159, 2.0
    %v166 = vsub.f32 %v55, %v162
    %v167 = vsub.f32 %v56, %v163
    %v168 = vsub.f32 %v57, %v164
    %v169 = vsub.f32 %v58, %v165
    %v170 = vmax.f32 %v166, 0.0
    %v171 = vmax.f32 %v167, 0.0
    %v172 = vmax.f32 %v168, 0.0
    %v173 = vmax.f32 %v169, 0.0
    %vm174 = vcmp.le.f32.partialorder %v170, 0.5625
    %vm175 = vcmp.le.f32.partialorder %v171, 0.5625
    %vm176 = vcmp.le.f32.partialorder %v172, 0.5625
    %vm177 = vcmp.le.f32.partialorder %v173, 0.5625
    %v178 = vld [vmem:[%s2] sm:$0xff]
    %v179 = vld [vmem:[%s2 + $0x8] sm:$0xff]
    %v180 = vld [vmem:[%s2 + $0x10] sm:$0xff]
    %v181 = vld [vmem:[%s2 + $0x18] sm:$0xff]
    %v182 = vld [vmem:[%s5] sm:$0x1]
    %183 = vset.pattern.permute.xlu0 0
    %184 = vperm.xlu0 %183, %v178
    %v185 = vpop.permute.xlu0 %184
    %186 = vset.pattern.permute.xlu0 0
    %187 = vperm.xlu0 %186, %v179
    %v188 = vpop.permute.xlu0 %187
    %189 = vset.pattern.permute.xlu0 0
    %190 = vperm.xlu0 %189, %v180
    %v191 = vpop.permute.xlu0 %190
    %192 = vset.pattern.permute.xlu0 0
    %193 = vperm.xlu0 %192, %v181
    %v194 = vpop.permute.xlu0 %193
    %v195 = vlaneseq
    %v196 = vshrl.u32 %v195, 7
    %v197 = vsub.s32 0, %v196
    %v198 = vrot.slane %v182, %v197
    %vm199 = vcmp.eq.s32.totalorder %v185, %v198
    %vm200 = vcmp.eq.s32.totalorder %v188, %v198
    %vm201 = vcmp.eq.s32.totalorder %v191, %v198
    %vm202 = vcmp.eq.s32.totalorder %v194, %v198
    %vm203 = vmand %vm174, %vm199
    %vm204 = vmand %vm175, %vm200
    %vm205 = vmand %vm176, %vm201
    %vm206 = vmand %vm177, %vm202
    %v207 = vsel %vm203, %v170, inf
    %v208 = vsel %vm204, %v171, inf
    %v209 = vsel %vm205, %v172, inf
    %v210 = vsel %vm206, %v173, inf
    %211 = vst [vmem:[#allocation2] sm:$0xff] %v207
    %212 = vst [vmem:[#allocation2 + $0x8] sm:$0xff] %v208
    %213 = vst [vmem:[#allocation2 + $0x10] sm:$0xff] %v209
    %214 = vst [vmem:[#allocation2 + $0x18] sm:$0xff] %v210
    // Predicated region
    $region26: #{tpu_custom_call.1} parent=1 // pred_check
      _
    $region27: #{tpu_custom_call.1} parent=1 // pred_check_branch
      %216 = sbr.rel (0) target = $region29
    $region28: #{tpu_custom_call.1} parent=1 // pred_region
      %s218 = ssub.s32 512, 512
      %219 = vsyncadd [#allocation3], %s218
      %s220 = sshll.u32 [#allocation2], 4
      %s221 = int_to_ptr.vmem [resolvable:$true] %s220
      %226 = dma.vmem_to_hbm [thread:$0]  %s221, 512, %s6, [#allocation3], 128, 128, 8
    $region29: #{tpu_custom_call.1} parent=1 // pred_fallthru
      _
    // Predicated region
    $region30: #{tpu_custom_call.1} parent=1 // pred_check
      _
    $region31: #{tpu_custom_call.1} parent=1 // pred_check_branch
      %228 = sbr.rel (0) target = $region33
    $region32: #{tpu_custom_call.1} parent=1 // pred_region
      %229 = dma.done [#allocation3], 512
    $region33: #{tpu_custom_call.1} parent=1 // pred_fallthru
      _
    %230 = vsyncpa [#allocation3], 1

</llo_original>
